<compile_context>
chip_gen: v7x
topology: tpu7x:2x2x1
jax: 0.10.0
libtpu: 0.0.40
codegen_flags: <defaults>
</compile_context>

<pallas_src>
import functools
import math

import jax
import jax.numpy as jnp
from jax.experimental import pallas as pl
from jax.experimental.pallas import tpu as pltpu

LANE = 128
SUBLANE_BF16 = 16
_MiB = 1024 * 1024


def _round_up(x, m):
    return ((x + m - 1) // m) * m


def _sdae_kernel(num_relu_layers, n_layers, *refs):
    """Chained Linear (+ReLU) layers on one batch tile.

    refs layout:
      refs[0]                x tile   [TILE_B, d0_pad]        bf16
      refs[1 : 1+L]          weights  [in_pad_i, out_pad_i]   bf16 (VMEM-resident)
      refs[1+L : 1+2L]       biases   [1, out_pad_i]          f32  (VMEM-resident)
      refs[1+2L]             out tile [TILE_B, out_pad]       f32
    """
    x_ref = refs[0]
    w_refs = refs[1:1 + n_layers]
    b_refs = refs[1 + n_layers:1 + 2 * n_layers]
    out_ref = refs[1 + 2 * n_layers]

    h = x_ref[...]                                            # bf16 activations
    for li in range(n_layers):
        acc = jnp.dot(h, w_refs[li][...], preferred_element_type=jnp.float32)
        acc = acc + b_refs[li][...]                           # f32 bias (row broadcast)
        if li < num_relu_layers:
            acc = jnp.maximum(acc, 0.0)                       # ReLU in f32
        if li + 1 < n_layers:
            h = acc.astype(jnp.bfloat16)                      # bf16 between layers
        else:
            out_ref[...] = acc                                # f32 logits (128-lane block)


def pack_params(weights, biases):
    """Pad each layer rectangularly to (round_up(in,128), round_up(out,128)).

    Called ONCE outside the per-call path (review feedback): padded weights are
    written to HBM a single time and then re-used by every forward call.
    """
    w_padded, b_padded = [], []
    for w, b in zip(weights, biases):
        d_in, d_out = w.shape
        dip, dop = _round_up(d_in, LANE), _round_up(d_out, LANE)
        wp = jnp.zeros((dip, dop), jnp.bfloat16).at[:d_in, :d_out].set(
            w.astype(jnp.bfloat16))
        bp = jnp.zeros((1, dop), jnp.float32).at[:, :d_out].set(
            b.astype(jnp.float32))
        w_padded.append(wp)
        b_padded.append(bp)
    return tuple(w_padded), tuple(b_padded)


def _pick_tile_b(batch, requested, d0_pad, out_pad, max_dpad, weight_bytes):
    """Pick the batch tile: big for throughput, but never over-pad a tiny batch
    and never blow the (v7x-sized) VMEM budget."""
    tile = min(requested, _round_up(batch, SUBLANE_BF16))
    tile = max(SUBLANE_BF16, (tile // SUBLANE_BF16) * SUBLANE_BF16)
    budget = 48 * _MiB  # conservative slice of v7x's 64 MiB physical VMEM / TC

    def need(t):
        return (weight_bytes
                + 2 * t * d0_pad * 2        # x tile, bf16, double-buffered
                + 2 * t * out_pad * 4       # out tile, f32, double-buffered
                + 2 * t * max_dpad * 6)     # f32 acc + bf16 activation temps

    while tile > SUBLANE_BF16 and need(tile) > budget:
        tile = max(SUBLANE_BF16, ((tile // 2) // SUBLANE_BF16) * SUBLANE_BF16)
    return tile, need(tile)


@functools.partial(jax.jit, static_argnames=("num_relu_layers", "out_dim", "tile_b"))
def sdae_forward(x, w_padded, b_padded, *, num_relu_layers, out_dim, tile_b=512):
    """x: [B, d0] f32.  w_padded/b_padded: outputs of pack_params.  Returns [B, out_dim] f32."""
    B, d0 = x.shape
    n_layers = len(w_padded)
    d0_pad = w_padded[0].shape[0]
    out_pad = w_padded[-1].shape[1]
    max_dpad = max(max(w.shape) for w in w_padded)

    weight_bytes = (sum(int(w.size) * 2 for w in w_padded)
                    + sum(int(b.size) * 4 for b in b_padded))
    tile_b_eff, vmem_need = _pick_tile_b(
        B, tile_b, d0_pad, out_pad, max_dpad, weight_bytes)

    # Pad batch to a multiple of the tile; pre-cast activations to bf16.
    b_rows = _round_up(max(B, tile_b_eff), tile_b_eff)
    x_p = jnp.zeros((b_rows, d0_pad), jnp.bfloat16).at[:B, :d0].set(
        x.astype(jnp.bfloat16))

    grid = (b_rows // tile_b_eff,)
    kernel = functools.partial(_sdae_kernel, num_relu_layers, n_layers)

    # Constant operands: whole array resident in VMEM (single copy, no pipelining).
    # NOTE: if real SDAE dims ever push weight_bytes past the VMEM budget, add a
    # layer/K grid axis (or pltpu.emit_pipeline) to stream weights instead.
    resident = pl.BlockSpec(memory_space=pltpu.MemorySpace.VMEM)
    in_specs = ([pl.BlockSpec((tile_b_eff, d0_pad), lambda i: (i, 0))]
                + [resident] * (2 * n_layers))

    # Derived VMEM limit: never below the 32 MiB default, capped at v7x's 64 MiB.
    vmem_limit = int(min(64 * _MiB, max(32 * _MiB, 2 * vmem_need + 4 * _MiB)))

    out_p = pl.pallas_call(
        kernel,
        out_shape=jax.ShapeDtypeStruct((b_rows, out_pad), jnp.float32),
        grid=grid,
        in_specs=in_specs,
        out_specs=pl.BlockSpec((tile_b_eff, out_pad), lambda i: (i, 0)),
        compiler_params=pltpu.CompilerParams(
            dimension_semantics=("parallel",),
            vmem_limit_bytes=vmem_limit),
    )(x_p, *w_padded, *b_padded)

    return out_p[:B, :out_dim]


def _xavier_uniform(key, fan_in, fan_out, gain):
    limit = gain * math.sqrt(6.0 / (fan_in + fan_out))
    # Weight already transposed to [in, out].
    return jax.random.uniform(
        key, (fan_in, fan_out), dtype=jnp.float32, minval=-limit, maxval=limit)


def build_params(dimensions, key):
    """Deterministic parameter init mirroring StackedAutoEncoderModel.__init__.

    Encoder layers: xavier_uniform with gain = calculate_gain('relu') = sqrt(2),
    bias = 0 (default_initialise_weight_bias_). softmax_layer initialised
    deterministically with xavier_uniform(gain=1); forward semantics do not
    depend on the exact values.
    """
    gain_relu = math.sqrt(2.0)
    weights, biases = [], []

    # Encoder: pairs over dimensions, last encoder layer has no activation.
    for d_in, d_out in zip(dimensions[:-1], dimensions[1:]):
        key, sub = jax.random.split(key)
        weights.append(_xavier_uniform(sub, d_in, d_out, gain_relu))
        biases.append(jnp.zeros((1, d_out), jnp.float32))

    # softmax_layer: Linear(dimensions[-1], 2)
    key, sub = jax.random.split(key)
    weights.append(_xavier_uniform(sub, dimensions[-1], 2, 1.0))
    biases.append(jnp.zeros((1, 2), jnp.float32))

    num_relu_layers = len(dimensions) - 2  # encoder units with ReLU
    return weights, biases, num_relu_layers


def reference_forward(x, weights, biases, num_relu_layers):
    """Pure-JAX reference using the same bf16-input / f32-accumulate recipe."""
    n_layers = len(weights)
    h = x.astype(jnp.bfloat16)
    for li, (w, b) in enumerate(zip(weights, biases)):
        acc = jnp.dot(h, w.astype(jnp.bfloat16),
                      preferred_element_type=jnp.float32) + b
        if li < num_relu_layers:
            acc = jnp.maximum(acc, 0.0)
        h = acc.astype(jnp.bfloat16) if li + 1 < n_layers else acc
    return h


if __name__ == "__main__":
    # Small, forward-consistent shapes: dimensions stack [32, 16, 16, 8], batch 2.
    dimensions = [32, 16, 16, 8]
    batch = 2

    key = jax.random.PRNGKey(0)
    key, xkey = jax.random.split(key)
    x = jax.random.normal(xkey, (batch, dimensions[0]), dtype=jnp.float32)

    weights, biases, num_relu = build_params(dimensions, key)

    # One-time parameter packing (hoisted out of the per-call path).
    w_packed, b_packed = pack_params(weights, biases)

    out = sdae_forward(x, w_packed, b_packed,
                       num_relu_layers=num_relu, out_dim=2)
    out = jax.block_until_ready(out)

    ref = reference_forward(x, weights, biases, num_relu)
    assert out.shape == (batch, 2), out.shape
    assert jnp.allclose(out, ref, atol=1e-3, rtol=1e-3), "mismatch vs pure-JAX reference"

    print("KERNEL_OK")
</pallas_src>

<mosaic_0001>
module attributes {stable_mosaic.version = 11 : i64} {
  func.func @_sdae_kernel(%arg0: i32, %arg1: memref<16x128xbf16, #tpu.memory_space<vmem>>, %arg2: memref<128x128xbf16, #tpu.memory_space<vmem>>, %arg3: memref<128x128xbf16, #tpu.memory_space<vmem>>, %arg4: memref<128x128xbf16, #tpu.memory_space<vmem>>, %arg5: memref<128x128xbf16, #tpu.memory_space<vmem>>, %arg6: memref<1x128xf32, #tpu.memory_space<vmem>>, %arg7: memref<1x128xf32, #tpu.memory_space<vmem>>, %arg8: memref<1x128xf32, #tpu.memory_space<vmem>>, %arg9: memref<1x128xf32, #tpu.memory_space<vmem>>, %arg10: memref<16x128xf32, #tpu.memory_space<vmem>>) attributes {dimension_semantics = [#tpu.dimension_semantics<parallel>], iteration_bounds = array<i64: 1>, scalar_prefetch = 0 : i64, scratch_operands = 0 : i64, tpu.core_type = #tpu.core_type<tc>, window_params = [{transform_indices = @transform_0, window_bounds = array<i64: 16, 128>}, {pipeline_mode = #tpu.pipeline_mode<synchronous>, transform_indices = @transform_1, window_bounds = array<i64: 128, 128>}, {pipeline_mode = #tpu.pipeline_mode<synchronous>, transform_indices = @transform_2, window_bounds = array<i64: 128, 128>}, {pipeline_mode = #tpu.pipeline_mode<synchronous>, transform_indices = @transform_3, window_bounds = array<i64: 128, 128>}, {pipeline_mode = #tpu.pipeline_mode<synchronous>, transform_indices = @transform_4, window_bounds = array<i64: 128, 128>}, {pipeline_mode = #tpu.pipeline_mode<synchronous>, transform_indices = @transform_5, window_bounds = array<i64: 1, 128>}, {pipeline_mode = #tpu.pipeline_mode<synchronous>, transform_indices = @transform_6, window_bounds = array<i64: 1, 128>}, {pipeline_mode = #tpu.pipeline_mode<synchronous>, transform_indices = @transform_7, window_bounds = array<i64: 1, 128>}, {pipeline_mode = #tpu.pipeline_mode<synchronous>, transform_indices = @transform_8, window_bounds = array<i64: 1, 128>}, {transform_indices = @transform_9, window_bounds = array<i64: 16, 128>}]} {
    %c0 = arith.constant 0 : index
    %c0_0 = arith.constant 0 : index
    %0 = vector.load %arg1[%c0, %c0_0] : memref<16x128xbf16, #tpu.memory_space<vmem>>, vector<16x128xbf16>
    %c0_1 = arith.constant 0 : index
    %c0_2 = arith.constant 0 : index
    %1 = vector.load %arg2[%c0_1, %c0_2] : memref<128x128xbf16, #tpu.memory_space<vmem>>, vector<128x128xbf16>
    %cst = arith.constant dense<0.000000e+00> : vector<16x128xf32>
    %2 = tpu.matmul %0, %1, %cst {dimension_numbers = #tpu.dot_dimension_numbers<[1], [0], [0], [1], [0, 0, 1, 1], [], []>} : vector<16x128xbf16>, vector<128x128xbf16>, vector<16x128xf32> -> vector<16x128xf32>
    %c0_3 = arith.constant 0 : index
    %c0_4 = arith.constant 0 : index
    %3 = vector.load %arg6[%c0_3, %c0_4] : memref<1x128xf32, #tpu.memory_space<vmem>>, vector<1x128xf32>
    %4 = vector.broadcast %3 : vector<1x128xf32> to vector<16x128xf32>
    %5 = arith.addf %2, %4 : vector<16x128xf32>
    %cst_5 = arith.constant 0.000000e+00 : f32
    %6 = vector.broadcast %cst_5 : f32 to vector<16x128xf32>
    %7 = arith.maximumf %5, %6 : vector<16x128xf32>
    %8 = arith.truncf %7 : vector<16x128xf32> to vector<16x128xbf16>
    %c0_6 = arith.constant 0 : index
    %c0_7 = arith.constant 0 : index
    %9 = vector.load %arg3[%c0_6, %c0_7] : memref<128x128xbf16, #tpu.memory_space<vmem>>, vector<128x128xbf16>
    %cst_8 = arith.constant dense<0.000000e+00> : vector<16x128xf32>
    %10 = tpu.matmul %8, %9, %cst_8 {dimension_numbers = #tpu.dot_dimension_numbers<[1], [0], [0], [1], [0, 0, 1, 1], [], []>} : vector<16x128xbf16>, vector<128x128xbf16>, vector<16x128xf32> -> vector<16x128xf32>
    %c0_9 = arith.constant 0 : index
    %c0_10 = arith.constant 0 : index
    %11 = vector.load %arg7[%c0_9, %c0_10] : memref<1x128xf32, #tpu.memory_space<vmem>>, vector<1x128xf32>
    %12 = vector.broadcast %11 : vector<1x128xf32> to vector<16x128xf32>
    %13 = arith.addf %10, %12 : vector<16x128xf32>
    %cst_11 = arith.constant 0.000000e+00 : f32
    %14 = vector.broadcast %cst_11 : f32 to vector<16x128xf32>
    %15 = arith.maximumf %13, %14 : vector<16x128xf32>
    %16 = arith.truncf %15 : vector<16x128xf32> to vector<16x128xbf16>
    %c0_12 = arith.constant 0 : index
    %c0_13 = arith.constant 0 : index
    %17 = vector.load %arg4[%c0_12, %c0_13] : memref<128x128xbf16, #tpu.memory_space<vmem>>, vector<128x128xbf16>
    %cst_14 = arith.constant dense<0.000000e+00> : vector<16x128xf32>
    %18 = tpu.matmul %16, %17, %cst_14 {dimension_numbers = #tpu.dot_dimension_numbers<[1], [0], [0], [1], [0, 0, 1, 1], [], []>} : vector<16x128xbf16>, vector<128x128xbf16>, vector<16x128xf32> -> vector<16x128xf32>
    %c0_15 = arith.constant 0 : index
    %c0_16 = arith.constant 0 : index
    %19 = vector.load %arg8[%c0_15, %c0_16] : memref<1x128xf32, #tpu.memory_space<vmem>>, vector<1x128xf32>
    %20 = vector.broadcast %19 : vector<1x128xf32> to vector<16x128xf32>
    %21 = arith.addf %18, %20 : vector<16x128xf32>
    %22 = arith.truncf %21 : vector<16x128xf32> to vector<16x128xbf16>
    %c0_17 = arith.constant 0 : index
    %c0_18 = arith.constant 0 : index
    %23 = vector.load %arg5[%c0_17, %c0_18] : memref<128x128xbf16, #tpu.memory_space<vmem>>, vector<128x128xbf16>
    %cst_19 = arith.constant dense<0.000000e+00> : vector<16x128xf32>
    %24 = tpu.matmul %22, %23, %cst_19 {dimension_numbers = #tpu.dot_dimension_numbers<[1], [0], [0], [1], [0, 0, 1, 1], [], []>} : vector<16x128xbf16>, vector<128x128xbf16>, vector<16x128xf32> -> vector<16x128xf32>
    %c0_20 = arith.constant 0 : index
    %c0_21 = arith.constant 0 : index
    %25 = vector.load %arg9[%c0_20, %c0_21] : memref<1x128xf32, #tpu.memory_space<vmem>>, vector<1x128xf32>
    %26 = vector.broadcast %25 : vector<1x128xf32> to vector<16x128xf32>
    %27 = arith.addf %24, %26 : vector<16x128xf32>
    %c0_22 = arith.constant 0 : index
    %c0_23 = arith.constant 0 : index
    %28 = vector.load %arg10[%c0_22, %c0_23] : memref<16x128xf32, #tpu.memory_space<vmem>>, vector<16x128xf32>
    tpu.vector_store %arg10[%c0_22, %c0_23], %27 {strides = array<i32>} : memref<16x128xf32, #tpu.memory_space<vmem>>, vector<16x128xf32>,
    return
  }
  func.func @transform_0(%arg0: i32) -> (i32, i32) {
    %c0_i32 = arith.constant 0 : i32
    %c0_i32_0 = arith.constant 0 : i32
    return %arg0, %c0_i32 : i32, i32
  }
  func.func @transform_1(%arg0: i32) -> (i32, i32) {
    %c0_i32 = arith.constant 0 : i32
    %c0_i32_0 = arith.constant 0 : i32
    %c0_i32_1 = arith.constant 0 : i32
    return %c0_i32, %c0_i32_0 : i32, i32
  }
  func.func @transform_2(%arg0: i32) -> (i32, i32) {
    %c0_i32 = arith.constant 0 : i32
    %c0_i32_0 = arith.constant 0 : i32
    %c0_i32_1 = arith.constant 0 : i32
    return %c0_i32, %c0_i32_0 : i32, i32
  }
  func.func @transform_3(%arg0: i32) -> (i32, i32) {
    %c0_i32 = arith.constant 0 : i32
    %c0_i32_0 = arith.constant 0 : i32
    %c0_i32_1 = arith.constant 0 : i32
    return %c0_i32, %c0_i32_0 : i32, i32
  }
  func.func @transform_4(%arg0: i32) -> (i32, i32) {
    %c0_i32 = arith.constant 0 : i32
    %c0_i32_0 = arith.constant 0 : i32
    %c0_i32_1 = arith.constant 0 : i32
    return %c0_i32, %c0_i32_0 : i32, i32
  }
  func.func @transform_5(%arg0: i32) -> (i32, i32) {
    %c0_i32 = arith.constant 0 : i32
    %c0_i32_0 = arith.constant 0 : i32
    %c0_i32_1 = arith.constant 0 : i32
    return %c0_i32, %c0_i32_0 : i32, i32
  }
  func.func @transform_6(%arg0: i32) -> (i32, i32) {
    %c0_i32 = arith.constant 0 : i32
    %c0_i32_0 = arith.constant 0 : i32
    %c0_i32_1 = arith.constant 0 : i32
    return %c0_i32, %c0_i32_0 : i32, i32
  }
  func.func @transform_7(%arg0: i32) -> (i32, i32) {
    %c0_i32 = arith.constant 0 : i32
    %c0_i32_0 = arith.constant 0 : i32
    %c0_i32_1 = arith.constant 0 : i32
    return %c0_i32, %c0_i32_0 : i32, i32
  }
  func.func @transform_8(%arg0: i32) -> (i32, i32) {
    %c0_i32 = arith.constant 0 : i32
    %c0_i32_0 = arith.constant 0 : i32
    %c0_i32_1 = arith.constant 0 : i32
    return %c0_i32, %c0_i32_0 : i32, i32
  }
  func.func @transform_9(%arg0: i32) -> (i32, i32) {
    %c0_i32 = arith.constant 0 : i32
    %c0_i32_0 = arith.constant 0 : i32
    return %arg0, %c0_i32 : i32, i32
  }
}

</mosaic_0001>

<llo_original>
// kernel: sdae_forward.1
$region0: #{sdae_forward.1}
  #allocation0 [shape = 'u32[]', space=smem, size = 0x4, offset = 0x4, fixed_abs, tag = 'smem constant byte address 0x4 - core index']
  #allocation1 [shape = 'u32[144,128]{1,0:T(1,128)}', space=vmem, size = 0x12000, scoped, tag = 'internal scratch']
  %s0 = inlined_call_operand.vmem [shape: bf16[16,128], index: 0, kind: input, shape index: {}]
  %s1 = inlined_call_operand.hbm [shape: bf16[128,128], index: 1, kind: input, shape index: {}]
  %s2 = inlined_call_operand.hbm [shape: bf16[128,128], index: 2, kind: input, shape index: {}]
  %s3 = inlined_call_operand.hbm [shape: bf16[128,128], index: 3, kind: input, shape index: {}]
  %s4 = inlined_call_operand.hbm [shape: bf16[128,128], index: 4, kind: input, shape index: {}]
  %s5 = inlined_call_operand.vmem [shape: f32[1,128], index: 5, kind: input, shape index: {}]
  %s6 = inlined_call_operand.vmem [shape: f32[1,128], index: 6, kind: input, shape index: {}]
  %s7 = inlined_call_operand.vmem [shape: f32[1,128], index: 7, kind: input, shape index: {}]
  %s8 = inlined_call_operand.vmem [shape: f32[1,128], index: 8, kind: input, shape index: {}]
  %s9 = inlined_call_operand.vmem [shape: f32[16,128], index: 9, kind: output, shape index: {}]
  %s10 = sld [smem:[#allocation0]]
  $region62: #{sdae_forward.1} parent=0
    _
  %s12 = ssub.s32 1, %s10
  %s13 = scalar_select 0, %s12, %s10
  $region1: #{sdae_forward.1} parent=0
    #allocation2 [shape = 'u8[32768]{0}', space=vmem, size = 0x8000, scoped, tag = 'input window, operand 1, single buffered']
    #allocation3 [shape = 's32[1]{0}', space=sflag, size = 0x4, scoped, tag = 'scoped memory for sdae_forward.1']
    #allocation4 [shape = 'u8[32768]{0}', space=vmem, size = 0x8000, scoped, tag = 'input window, operand 2, single buffered']
    #allocation5 [shape = 's32[1]{0}', space=sflag, size = 0x4, scoped, tag = 'scoped memory for sdae_forward.1']
    #allocation6 [shape = 'u8[32768]{0}', space=vmem, size = 0x8000, scoped, tag = 'input window, operand 3, single buffered']
    #allocation7 [shape = 'u8[32768]{0}', space=vmem, size = 0x8000, scoped, tag = 'input window, operand 4, single buffered']
    #allocation8 [shape = 's32[1]{0}', space=sflag, size = 0x4, scoped, tag = 'scoped memory for sdae_forward.1']
    %14 = vsyncpa [#allocation3], 0
    %15 = vsyncpa [#allocation5], 0
    %16 = vsyncpa [#allocation8], 0
    // Predicated region
    $region2: #{sdae_forward.1} parent=1 // pred_check
      _
    $region3: #{sdae_forward.1} parent=1 // pred_check_branch
      %18 = sbr.rel (0) target = $region5
    $region4: #{sdae_forward.1} parent=1 // pred_region
      _
    $region5: #{sdae_forward.1} parent=1 // pred_fallthru
      _
    // Predicated region
    $region6: #{sdae_forward.1} parent=1 // pred_check
      _
    $region7: #{sdae_forward.1} parent=1 // pred_check_branch
      %20 = sbr.rel (0) target = $region9
    $region8: #{sdae_forward.1} parent=1 // pred_region
      %s22 = ssub.s32 1024, 1024
      %23 = vsyncadd [#allocation3], %s22
      %s24 = sshll.u32 [#allocation2], 4
      %s25 = int_to_ptr.vmem [resolvable:$true] %s24
      %30 = dma.hbm_to_vmem [thread:$0]  %s1, 1024, %s25, [#allocation3], 64, 64, 4
    $region9: #{sdae_forward.1} parent=1 // pred_fallthru
      _
    // Predicated region
    $region10: #{sdae_forward.1} parent=1 // pred_check
      _
    $region11: #{sdae_forward.1} parent=1 // pred_check_branch
      %32 = sbr.rel (0) target = $region13
    $region12: #{sdae_forward.1} parent=1 // pred_region
      %s34 = ssub.s32 1024, 1024
      %35 = vsyncadd [#allocation5], %s34
      %s36 = sshll.u32 [#allocation4], 4
      %s37 = int_to_ptr.vmem [resolvable:$true] %s36
      %42 = dma.hbm_to_vmem [thread:$0]  %s2, 1024, %s37, [#allocation5], 64, 64, 4
    $region13: #{sdae_forward.1} parent=1 // pred_fallthru
      _
    // Predicated region
    $region14: #{sdae_forward.1} parent=1 // pred_check
      _
    $region15: #{sdae_forward.1} parent=1 // pred_check_branch
      %44 = sbr.rel (0) target = $region17
    $region16: #{sdae_forward.1} parent=1 // pred_region
      %s46 = ssub.s32 1024, 1024
      %47 = vsyncadd [#allocation5], %s46
      %s48 = sshll.u32 [#allocation6], 4
      %s49 = int_to_ptr.vmem [resolvable:$true] %s48
      %54 = dma.hbm_to_vmem [thread:$0]  %s3, 1024, %s49, [#allocation5], 64, 64, 4
    $region17: #{sdae_forward.1} parent=1 // pred_fallthru
      _
    // Predicated region
    $region18: #{sdae_forward.1} parent=1 // pred_check
      _
    $region19: #{sdae_forward.1} parent=1 // pred_check_branch
      %56 = sbr.rel (0) target = $region21
    $region20: #{sdae_forward.1} parent=1 // pred_region
      %s58 = ssub.s32 1024, 1024
      %59 = vsyncadd [#allocation8], %s58
      %s60 = sshll.u32 [#allocation7], 4
      %s61 = int_to_ptr.vmem [resolvable:$true] %s60
      %66 = dma.hbm_to_vmem [thread:$0]  %s4, 1024, %s61, [#allocation8], 64, 64, 4
    $region21: #{sdae_forward.1} parent=1 // pred_fallthru
      _
    // Predicated region
    $region22: #{sdae_forward.1} parent=1 // pred_check
      _
    $region23: #{sdae_forward.1} parent=1 // pred_check_branch
      %68 = sbr.rel (0) target = $region25
    $region24: #{sdae_forward.1} parent=1 // pred_region
      _
    $region25: #{sdae_forward.1} parent=1 // pred_fallthru
      _
    // Predicated region
    $region26: #{sdae_forward.1} parent=1 // pred_check
      _
    $region27: #{sdae_forward.1} parent=1 // pred_check_branch
      %70 = sbr.rel (0) target = $region29
    $region28: #{sdae_forward.1} parent=1 // pred_region
      _
    $region29: #{sdae_forward.1} parent=1 // pred_fallthru
      _
    // Predicated region
    $region30: #{sdae_forward.1} parent=1 // pred_check
      _
    $region31: #{sdae_forward.1} parent=1 // pred_check_branch
      %72 = sbr.rel (0) target = $region33
    $region32: #{sdae_forward.1} parent=1 // pred_region
      _
    $region33: #{sdae_forward.1} parent=1 // pred_fallthru
      _
    // Predicated region
    $region34: #{sdae_forward.1} parent=1 // pred_check
      _
    $region35: #{sdae_forward.1} parent=1 // pred_check_branch
      %74 = sbr.rel (0) target = $region37
    $region36: #{sdae_forward.1} parent=1 // pred_region
      _
    $region37: #{sdae_forward.1} parent=1 // pred_fallthru
      _
    // Predicated region
    $region38: #{sdae_forward.1} parent=1 // pred_check
      _
    $region39: #{sdae_forward.1} parent=1 // pred_check_branch
      %76 = sbr.rel (0) target = $region41
    $region40: #{sdae_forward.1} parent=1 // pred_region
      %77 = dma.done [#allocation3], 1024
    $region41: #{sdae_forward.1} parent=1 // pred_fallthru
      _
    // Predicated region
    $region42: #{sdae_forward.1} parent=1 // pred_check
      _
    $region43: #{sdae_forward.1} parent=1 // pred_check_branch
      %79 = sbr.rel (0) target = $region45
    $region44: #{sdae_forward.1} parent=1 // pred_region
      %80 = dma.done [#allocation5], 1024
    $region45: #{sdae_forward.1} parent=1 // pred_fallthru
      _
    // Predicated region
    $region46: #{sdae_forward.1} parent=1 // pred_check
      _
    $region47: #{sdae_forward.1} parent=1 // pred_check_branch
      %82 = sbr.rel (0) target = $region49
    $region48: #{sdae_forward.1} parent=1 // pred_region
      %83 = dma.done [#allocation5], 1024
    $region49: #{sdae_forward.1} parent=1 // pred_fallthru
      _
    // Predicated region
    $region50: #{sdae_forward.1} parent=1 // pred_check
      _
    $region51: #{sdae_forward.1} parent=1 // pred_check_branch
      %85 = sbr.rel (0) target = $region53
    $region52: #{sdae_forward.1} parent=1 // pred_region
      %86 = dma.done [#allocation8], 1024
    $region53: #{sdae_forward.1} parent=1 // pred_fallthru
      _
    %v88 = vld [vmem:[%s0] sm:$0xf]
    %v89 = vld [vmem:[%s0 + $0x4] sm:$0xf]
    %v90 = vld [vmem:[#allocation2] sm:$0xf]
    %v91 = vld [vmem:[#allocation2 + $0x4] sm:$0xf]
    %v92 = vld [vmem:[#allocation2 + $0x8] sm:$0xf]
    %v93 = vld [vmem:[#allocation2 + $0xc] sm:$0xf]
    %v94 = vld [vmem:[#allocation2 + $0x10] sm:$0xf]
    %v95 = vld [vmem:[#allocation2 + $0x14] sm:$0xf]
    %v96 = vld [vmem:[#allocation2 + $0x18] sm:$0xf]
    %v97 = vld [vmem:[#allocation2 + $0x1c] sm:$0xf]
    %v98 = vld [vmem:[#allocation2 + $0x20] sm:$0xf]
    %v99 = vld [vmem:[#allocation2 + $0x24] sm:$0xf]
    %v100 = vld [vmem:[#allocation2 + $0x28] sm:$0xf]
    %v101 = vld [vmem:[#allocation2 + $0x2c] sm:$0xf]
    %v102 = vld [vmem:[#allocation2 + $0x30] sm:$0xf]
    %v103 = vld [vmem:[#allocation2 + $0x34] sm:$0xf]
    %v104 = vld [vmem:[#allocation2 + $0x38] sm:$0xf]
    %v105 = vld [vmem:[#allocation2 + $0x3c] sm:$0xf]
    %v106 = vld [vmem:[%s5] sm:$0x1]
    %v108 = vlaneseq
    %v109 = vshrl.u32 %v108, 7
    %v110 = vsub.s32 0, %v109
    %v111 = vrot.slane %v106, %v110
    %v115 = vunpack.c.l.b16 %v88
    %v116 = vunpack.c.l.b16 %v89
    %v117 = vpack.c.b16 %v116, %v115
    %v135 = vunpack.c.l.b16 %v90
    %v136 = vunpack.c.l.b16 %v91
    %v137 = vunpack.c.l.b16 %v92
    %v138 = vunpack.c.l.b16 %v93
    %v139 = vunpack.c.l.b16 %v94
    %v140 = vunpack.c.l.b16 %v95
    %v141 = vunpack.c.l.b16 %v96
    %v142 = vunpack.c.l.b16 %v97
    %v143 = vunpack.c.l.b16 %v98
    %v144 = vunpack.c.l.b16 %v99
    %v145 = vunpack.c.l.b16 %v100
    %v146 = vunpack.c.l.b16 %v101
    %v147 = vunpack.c.l.b16 %v102
    %v148 = vunpack.c.l.b16 %v103
    %v149 = vunpack.c.l.b16 %v104
    %v150 = vunpack.c.l.b16 %v105
    %v151 = vpack.c.b16 %v136, %v135
    %v152 = vpack.c.b16 %v138, %v137
    %v153 = vpack.c.b16 %v140, %v139
    %v154 = vpack.c.b16 %v142, %v141
    %v155 = vpack.c.b16 %v144, %v143
    %v156 = vpack.c.b16 %v146, %v145
    %v157 = vpack.c.b16 %v148, %v147
    %v158 = vpack.c.b16 %v150, %v149
    %167 = vmatprep.subr.bf16.mxu0 0
    %168 = vmatpush1.bf16.msra.mxu0 %v151
    %169 = vmatprep.subr.bf16.mxu0 0
    %170 = vmatpush1.bf16.msra.mxu0 %v152
    %171 = vmatprep.subr.bf16.mxu0 0
    %172 = vmatpush1.bf16.msra.mxu0 %v153
    %173 = vmatprep.subr.bf16.mxu0 0
    %174 = vmatpush1.bf16.msra.mxu0 %v154
    %175 = vmatprep.subr.bf16.mxu0 0
    %176 = vmatpush1.bf16.msra.mxu0 %v155
    %177 = vmatprep.subr.bf16.mxu0 0
    %178 = vmatpush1.bf16.msra.mxu0 %v156
    %179 = vmatprep.subr.bf16.mxu0 0
    %180 = vmatpush1.bf16.msra.mxu0 %v157
    %181 = vmatprep.subr.bf16.mxu0 0
    %182 = vmatpush1.bf16.msra.mxu0 %v158
    %183 = vmatprep.subr.bf16.mxu0 0
    %184 = vmatpush1.bf16.msra.mxu0 0
    %185 = vmatprep.subr.bf16.mxu0 0
    %186 = vmatpush1.bf16.msra.mxu0 0
    %187 = vmatprep.subr.bf16.mxu0 0
    %188 = vmatpush1.bf16.msra.mxu0 0
    %189 = vmatprep.subr.bf16.mxu0 0
    %190 = vmatpush1.bf16.msra.mxu0 0
    %191 = vmatprep.subr.bf16.mxu0 0
    %192 = vmatpush1.bf16.msra.mxu0 0
    %193 = vmatprep.subr.bf16.mxu0 0
    %194 = vmatpush1.bf16.msra.mxu0 0
    %195 = vmatprep.subr.bf16.mxu0 0
    %196 = vmatpush1.bf16.msra.mxu0 0
    %197 = vmatprep.subr.bf16.mxu0 0
    %198 = vmatpush1.bf16.msra.mxu0 0
    %199 = vmatprep.mubr.bf16.mxu0 0
    %200 = vmatmul.mubr.bf16.gmra.mrb[0].mxu0 %v117
    %v201 = vpop.f32.mrb[0].mxu0
    %v202 = vadd.f32 %v111, %v201
    %v203 = vpop.f32.mrb[0].mxu0
    %v204 = vpop.f32.mrb[0].mxu0
    %v205 = vadd.f32 %v111, %v204
    %v206 = vpop.f32.mrb[0].mxu0
    %207 = vdwg.mxu0
    %v208 = vmax.f32 %v202, 0.0
    %v209 = vmax.f32 %v205, 0.0
    %v210 = vpack.c.bf16 %v209, %v208
    %v211 = vld [vmem:[#allocation4] sm:$0xf]
    %v212 = vld [vmem:[#allocation4 + $0x4] sm:$0xf]
    %v213 = vld [vmem:[#allocation4 + $0x8] sm:$0xf]
    %v214 = vld [vmem:[#allocation4 + $0xc] sm:$0xf]
    %v215 = vld [vmem:[#allocation4 + $0x10] sm:$0xf]
    %v216 = vld [vmem:[#allocation4 + $0x14] sm:$0xf]
    %v217 = vld [vmem:[#allocation4 + $0x18] sm:$0xf]
    %v218 = vld [vmem:[#allocation4 + $0x1c] sm:$0xf]
    %v219 = vld [vmem:[#allocation4 + $0x20] sm:$0xf]
    %v220 = vld [vmem:[#allocation4 + $0x24] sm:$0xf]
    %v221 = vld [vmem:[#allocation4 + $0x28] sm:$0xf]
    %v222 = vld [vmem:[#allocation4 + $0x2c] sm:$0xf]
    %v223 = vld [vmem:[#allocation4 + $0x30] sm:$0xf]
    %v224 = vld [vmem:[#allocation4 + $0x34] sm:$0xf]
    %v225 = vld [vmem:[#allocation4 + $0x38] sm:$0xf]
    %v226 = vld [vmem:[#allocation4 + $0x3c] sm:$0xf]
    %v227 = vld [vmem:[%s6] sm:$0x1]
    %v229 = vlaneseq
    %v230 = vshrl.u32 %v229, 7
    %v231 = vsub.s32 0, %v230
    %v232 = vrot.slane %v227, %v231
    %v250 = vunpack.c.l.b16 %v211
    %v251 = vunpack.c.l.b16 %v212
    %v252 = vunpack.c.l.b16 %v213
    %v253 = vunpack.c.l.b16 %v214
    %v254 = vunpack.c.l.b16 %v215
    %v255 = vunpack.c.l.b16 %v216
    %v256 = vunpack.c.l.b16 %v217
    %v257 = vunpack.c.l.b16 %v218
    %v258 = vunpack.c.l.b16 %v219
    %v259 = vunpack.c.l.b16 %v220
    %v260 = vunpack.c.l.b16 %v221
    %v261 = vunpack.c.l.b16 %v222
    %v262 = vunpack.c.l.b16 %v223
    %v263 = vunpack.c.l.b16 %v224
    %v264 = vunpack.c.l.b16 %v225
    %v265 = vunpack.c.l.b16 %v226
    %v266 = vpack.c.b16 %v251, %v250
    %v267 = vpack.c.b16 %v253, %v252
    %v268 = vpack.c.b16 %v255, %v254
    %v269 = vpack.c.b16 %v257, %v256
    %v270 = vpack.c.b16 %v259, %v258
    %v271 = vpack.c.b16 %v261, %v260
    %v272 = vpack.c.b16 %v263, %v262
    %v273 = vpack.c.b16 %v265, %v264
    %282 = vmatprep.subr.bf16.mxu0 0
    %283 = vmatpush1.bf16.msra.mxu0 %v266
    %284 = vmatprep.subr.bf16.mxu0 0
    %285 = vmatpush1.bf16.msra.mxu0 %v267
    %286 = vmatprep.subr.bf16.mxu0 0
    %287 = vmatpush1.bf16.msra.mxu0 %v268
    %288 = vmatprep.subr.bf16.mxu0 0
    %289 = vmatpush1.bf16.msra.mxu0 %v269
    %290 = vmatprep.subr.bf16.mxu0 0
    %291 = vmatpush1.bf16.msra.mxu0 %v270
    %292 = vmatprep.subr.bf16.mxu0 0
    %293 = vmatpush1.bf16.msra.mxu0 %v271
    %294 = vmatprep.subr.bf16.mxu0 0
    %295 = vmatpush1.bf16.msra.mxu0 %v272
    %296 = vmatprep.subr.bf16.mxu0 0
    %297 = vmatpush1.bf16.msra.mxu0 %v273
    %298 = vmatprep.subr.bf16.mxu0 0
    %299 = vmatpush1.bf16.msra.mxu0 0
    %300 = vmatprep.subr.bf16.mxu0 0
    %301 = vmatpush1.bf16.msra.mxu0 0
    %302 = vmatprep.subr.bf16.mxu0 0
    %303 = vmatpush1.bf16.msra.mxu0 0
    %304 = vmatprep.subr.bf16.mxu0 0
    %305 = vmatpush1.bf16.msra.mxu0 0
    %306 = vmatprep.subr.bf16.mxu0 0
    %307 = vmatpush1.bf16.msra.mxu0 0
    %308 = vmatprep.subr.bf16.mxu0 0
    %309 = vmatpush1.bf16.msra.mxu0 0
    %310 = vmatprep.subr.bf16.mxu0 0
    %311 = vmatpush1.bf16.msra.mxu0 0
    %312 = vmatprep.subr.bf16.mxu0 0
    %313 = vmatpush1.bf16.msra.mxu0 0
    %314 = vmatprep.mubr.bf16.mxu0 0
    %315 = vmatmul.mubr.bf16.gmra.mrb[0].mxu0 %v210
    %v316 = vpop.f32.mrb[0].mxu0
    %v317 = vadd.f32 %v232, %v316
    %v318 = vpop.f32.mrb[0].mxu0
    %v319 = vpop.f32.mrb[0].mxu0
    %v320 = vadd.f32 %v232, %v319
    %v321 = vpop.f32.mrb[0].mxu0
    %322 = vdwg.mxu0
    %v323 = vmax.f32 %v317, 0.0
    %v324 = vmax.f32 %v320, 0.0
    %v325 = vpack.c.bf16 %v324, %v323
    %v326 = vld [vmem:[#allocation6] sm:$0xf]
    %v327 = vld [vmem:[#allocation6 + $0x4] sm:$0xf]
    %v328 = vld [vmem:[#allocation6 + $0x8] sm:$0xf]
    %v329 = vld [vmem:[#allocation6 + $0xc] sm:$0xf]
    %v330 = vld [vmem:[#allocation6 + $0x10] sm:$0xf]
    %v331 = vld [vmem:[#allocation6 + $0x14] sm:$0xf]
    %v332 = vld [vmem:[#allocation6 + $0x18] sm:$0xf]
    %v333 = vld [vmem:[#allocation6 + $0x1c] sm:$0xf]
    %v334 = vld [vmem:[#allocation6 + $0x20] sm:$0xf]
    %v335 = vld [vmem:[#allocation6 + $0x24] sm:$0xf]
    %v336 = vld [vmem:[#allocation6 + $0x28] sm:$0xf]
    %v337 = vld [vmem:[#allocation6 + $0x2c] sm:$0xf]
    %v338 = vld [vmem:[#allocation6 + $0x30] sm:$0xf]
    %v339 = vld [vmem:[#allocation6 + $0x34] sm:$0xf]
    %v340 = vld [vmem:[#allocation6 + $0x38] sm:$0xf]
    %v341 = vld [vmem:[#allocation6 + $0x3c] sm:$0xf]
    %v342 = vld [vmem:[%s7] sm:$0x1]
    %v344 = vlaneseq
    %v345 = vshrl.u32 %v344, 7
    %v346 = vsub.s32 0, %v345
    %v347 = vrot.slane %v342, %v346
    %v365 = vunpack.c.l.b16 %v326
    %v366 = vunpack.c.l.b16 %v327
    %v367 = vunpack.c.l.b16 %v328
    %v368 = vunpack.c.l.b16 %v329
    %v369 = vunpack.c.l.b16 %v330
    %v370 = vunpack.c.l.b16 %v331
    %v371 = vunpack.c.l.b16 %v332
    %v372 = vunpack.c.l.b16 %v333
    %v373 = vunpack.c.l.b16 %v334
    %v374 = vunpack.c.l.b16 %v335
    %v375 = vunpack.c.l.b16 %v336
    %v376 = vunpack.c.l.b16 %v337
    %v377 = vunpack.c.l.b16 %v338
    %v378 = vunpack.c.l.b16 %v339
    %v379 = vunpack.c.l.b16 %v340
    %v380 = vunpack.c.l.b16 %v341
    %v381 = vpack.c.b16 %v366, %v365
    %v382 = vpack.c.b16 %v368, %v367
    %v383 = vpack.c.b16 %v370, %v369
    %v384 = vpack.c.b16 %v372, %v371
    %v385 = vpack.c.b16 %v374, %v373
    %v386 = vpack.c.b16 %v376, %v375
    %v387 = vpack.c.b16 %v378, %v377
    %v388 = vpack.c.b16 %v380, %v379
    %397 = vmatprep.subr.bf16.mxu0 0
    %398 = vmatpush1.bf16.msra.mxu0 %v381
    %399 = vmatprep.subr.bf16.mxu0 0
    %400 = vmatpush1.bf16.msra.mxu0 %v382
    %401 = vmatprep.subr.bf16.mxu0 0
    %402 = vmatpush1.bf16.msra.mxu0 %v383
    %403 = vmatprep.subr.bf16.mxu0 0
    %404 = vmatpush1.bf16.msra.mxu0 %v384
    %405 = vmatprep.subr.bf16.mxu0 0
    %406 = vmatpush1.bf16.msra.mxu0 %v385
    %407 = vmatprep.subr.bf16.mxu0 0
    %408 = vmatpush1.bf16.msra.mxu0 %v386
    %409 = vmatprep.subr.bf16.mxu0 0
    %410 = vmatpush1.bf16.msra.mxu0 %v387
    %411 = vmatprep.subr.bf16.mxu0 0
    %412 = vmatpush1.bf16.msra.mxu0 %v388
    %413 = vmatprep.subr.bf16.mxu0 0
    %414 = vmatpush1.bf16.msra.mxu0 0
    %415 = vmatprep.subr.bf16.mxu0 0
    %416 = vmatpush1.bf16.msra.mxu0 0
    %417 = vmatprep.subr.bf16.mxu0 0
    %418 = vmatpush1.bf16.msra.mxu0 0
    %419 = vmatprep.subr.bf16.mxu0 0
    %420 = vmatpush1.bf16.msra.mxu0 0
    %421 = vmatprep.subr.bf16.mxu0 0
    %422 = vmatpush1.bf16.msra.mxu0 0
    %423 = vmatprep.subr.bf16.mxu0 0
    %424 = vmatpush1.bf16.msra.mxu0 0
    %425 = vmatprep.subr.bf16.mxu0 0
    %426 = vmatpush1.bf16.msra.mxu0 0
    %427 = vmatprep.subr.bf16.mxu0 0
    %428 = vmatpush1.bf16.msra.mxu0 0
    %429 = vmatprep.mubr.bf16.mxu0 0
    %430 = vmatmul.mubr.bf16.gmra.mrb[0].mxu0 %v325
    %v431 = vpop.f32.mrb[0].mxu0
    %v432 = vadd.f32 %v347, %v431
    %v433 = vpop.f32.mrb[0].mxu0
    %v434 = vpop.f32.mrb[0].mxu0
    %v435 = vadd.f32 %v347, %v434
    %v436 = vpop.f32.mrb[0].mxu0
    %437 = vdwg.mxu0
    %v438 = vpack.c.bf16 %v435, %v432
    %v439 = vld [vmem:[#allocation7] sm:$0xf]
    %v440 = vld [vmem:[#allocation7 + $0x4] sm:$0xf]
    %v441 = vld [vmem:[#allocation7 + $0x8] sm:$0xf]
    %v442 = vld [vmem:[#allocation7 + $0xc] sm:$0xf]
    %v443 = vld [vmem:[#allocation7 + $0x10] sm:$0xf]
    %v444 = vld [vmem:[#allocation7 + $0x14] sm:$0xf]
    %v445 = vld [vmem:[#allocation7 + $0x18] sm:$0xf]
    %v446 = vld [vmem:[#allocation7 + $0x1c] sm:$0xf]
    %v447 = vld [vmem:[#allocation7 + $0x20] sm:$0xf]
    %v448 = vld [vmem:[#allocation7 + $0x24] sm:$0xf]
    %v449 = vld [vmem:[#allocation7 + $0x28] sm:$0xf]
    %v450 = vld [vmem:[#allocation7 + $0x2c] sm:$0xf]
    %v451 = vld [vmem:[#allocation7 + $0x30] sm:$0xf]
    %v452 = vld [vmem:[#allocation7 + $0x34] sm:$0xf]
    %v453 = vld [vmem:[#allocation7 + $0x38] sm:$0xf]
    %v454 = vld [vmem:[#allocation7 + $0x3c] sm:$0xf]
    %v455 = vld [vmem:[%s8] sm:$0x1]
    %v457 = vlaneseq
    %v458 = vshrl.u32 %v457, 7
    %v459 = vsub.s32 0, %v458
    %v460 = vrot.slane %v455, %v459
    %v478 = vunpack.c.l.b16 %v439
    %v479 = vunpack.c.l.b16 %v440
    %v480 = vunpack.c.l.b16 %v441
    %v481 = vunpack.c.l.b16 %v442
    %v482 = vunpack.c.l.b16 %v443
    %v483 = vunpack.c.l.b16 %v444
    %v484 = vunpack.c.l.b16 %v445
    %v485 = vunpack.c.l.b16 %v446
    %v486 = vunpack.c.l.b16 %v447
    %v487 = vunpack.c.l.b16 %v448
    %v488 = vunpack.c.l.b16 %v449
    %v489 = vunpack.c.l.b16 %v450
    %v490 = vunpack.c.l.b16 %v451
    %v491 = vunpack.c.l.b16 %v452
    %v492 = vunpack.c.l.b16 %v453
    %v493 = vunpack.c.l.b16 %v454
    %v494 = vpack.c.b16 %v479, %v478
    %v495 = vpack.c.b16 %v481, %v480
    %v496 = vpack.c.b16 %v483, %v482
    %v497 = vpack.c.b16 %v485, %v484
    %v498 = vpack.c.b16 %v487, %v486
    %v499 = vpack.c.b16 %v489, %v488
    %v500 = vpack.c.b16 %v491, %v490
    %v501 = vpack.c.b16 %v493, %v492
    %510 = vmatprep.subr.bf16.mxu0 0
    %511 = vmatpush1.bf16.msra.mxu0 %v494
    %512 = vmatprep.subr.bf16.mxu0 0
    %513 = vmatpush1.bf16.msra.mxu0 %v495
    %514 = vmatprep.subr.bf16.mxu0 0
    %515 = vmatpush1.bf16.msra.mxu0 %v496
    %516 = vmatprep.subr.bf16.mxu0 0
    %517 = vmatpush1.bf16.msra.mxu0 %v497
    %518 = vmatprep.subr.bf16.mxu0 0
    %519 = vmatpush1.bf16.msra.mxu0 %v498
    %520 = vmatprep.subr.bf16.mxu0 0
    %521 = vmatpush1.bf16.msra.mxu0 %v499
    %522 = vmatprep.subr.bf16.mxu0 0
    %523 = vmatpush1.bf16.msra.mxu0 %v500
    %524 = vmatprep.subr.bf16.mxu0 0
    %525 = vmatpush1.bf16.msra.mxu0 %v501
    %526 = vmatprep.subr.bf16.mxu0 0
    %527 = vmatpush1.bf16.msra.mxu0 0
    %528 = vmatprep.subr.bf16.mxu0 0
    %529 = vmatpush1.bf16.msra.mxu0 0
    %530 = vmatprep.subr.bf16.mxu0 0
    %531 = vmatpush1.bf16.msra.mxu0 0
    %532 = vmatprep.subr.bf16.mxu0 0
    %533 = vmatpush1.bf16.msra.mxu0 0
    %534 = vmatprep.subr.bf16.mxu0 0
    %535 = vmatpush1.bf16.msra.mxu0 0
    %536 = vmatprep.subr.bf16.mxu0 0
    %537 = vmatpush1.bf16.msra.mxu0 0
    %538 = vmatprep.subr.bf16.mxu0 0
    %539 = vmatpush1.bf16.msra.mxu0 0
    %540 = vmatprep.subr.bf16.mxu0 0
    %541 = vmatpush1.bf16.msra.mxu0 0
    %542 = vmatprep.mubr.bf16.mxu0 0
    %543 = vmatmul.mubr.bf16.gmra.mrb[0].mxu0 %v438
    %v544 = vpop.f32.mrb[0].mxu0
    %v545 = vadd.f32 %v460, %v544
    %v546 = vpop.f32.mrb[0].mxu0
    %v547 = vpop.f32.mrb[0].mxu0
    %v548 = vadd.f32 %v460, %v547
    %v549 = vpop.f32.mrb[0].mxu0
    %550 = vdwg.mxu0
    %551 = vst [vmem:[%s9] sm:$0xff] %v545
    %552 = vst [vmem:[%s9 + $0x8] sm:$0xff] %v548
    // Predicated region
    $region54: #{sdae_forward.1} parent=1 // pred_check
      _
    $region55: #{sdae_forward.1} parent=1 // pred_check_branch
      %554 = sbr.rel (0) target = $region57
    $region56: #{sdae_forward.1} parent=1 // pred_region
      _
    $region57: #{sdae_forward.1} parent=1 // pred_fallthru
      _
    // Predicated region
    $region58: #{sdae_forward.1} parent=1 // pred_check
      _
    $region59: #{sdae_forward.1} parent=1 // pred_check_branch
      %556 = sbr.rel (0) target = $region61
    $region60: #{sdae_forward.1} parent=1 // pred_region
      _
    $region61: #{sdae_forward.1} parent=1 // pred_fallthru
      _
    %557 = vsyncpa [#allocation3], 1
    %558 = vsyncpa [#allocation5], 1
    %559 = vsyncpa [#allocation8], 1

</llo_original>
